<compile_context>
chip_gen: v7x
topology: tpu7x:2x2x1
jax: 0.10.0
libtpu: 0.0.40
codegen_flags: <defaults>
</compile_context>

<pallas_src>
import functools

import jax
import jax.numpy as jnp
from jax.experimental import pallas as pl
from jax.experimental.pallas import tpu as pltpu


def _round_up(x, m):
    return (x + m - 1) // m * m


def _vmem_capacity_bytes():
    try:
        info = pltpu.get_tpu_info()
        cap = int(getattr(info, "vmem_capacity_bytes", 0))
        if cap > 0:
            return cap
    except Exception:
        pass
    return 64 << 20  # conservative default (v7x per-TensorCore VMEM)


def _block_footprint_bytes(r_rows, tl_in, oc_tile, tl, k_dim):
    """Approximate per-grid-step VMEM footprint for the chosen tiling."""
    return (
        2 * r_rows * tl_in * 2      # double-buffered bf16 input slab
        + 2 * oc_tile * tl * 4      # double-buffered f32 output block
        + 2 * oc_tile * k_dim * 2   # bf16 tap-folded weights
        + k_dim * tl * 2            # in-kernel stacked bf16 MXU operand
        + oc_tile * tl * 4          # f32 matmul result / epilogue
        + oc_tile * 4 * 2           # bias
    )


def _pick_tile_l(l_out, halo, r_rows, oc_tile, k_dim, budget):
    """Largest lane tile (multiple of 128) whose VMEM footprint fits `budget`."""
    max_tl = min(_round_up(max(l_out, 128), 128), 4096)
    best = 128
    tl = 128
    while tl <= max_tl:
        tl_in = _round_up(tl + halo, 128)
        if _block_footprint_bytes(r_rows, tl_in, oc_tile, tl, k_dim) <= budget:
            best = tl
        tl += 128
    return best


# -----------------------------------------------------------------------------
# Pallas kernel: single tap-folded MXU matmul + bias + ReLU per tile
# -----------------------------------------------------------------------------
def _conv_block_kernel(a_ref, w_ref, b_ref, o_ref, *, lane_offsets, tile_l):
    # a_ref: (1, 1, R, TL_IN)  bf16  halo'd activation slab for this (n, lane tile)
    # w_ref: (OC_TILE, K)      bf16  tap-folded weights, K = KH*KW*CP
    # b_ref: (OC_TILE, 1)      f32   bias (broadcast over lanes)
    # o_ref: (1, OC_TILE, TL)  f32   lane-dense output tile
    x_win = a_ref[0, 0, :, :]                              # (R, TL_IN)
    if len(lane_offsets) == 1 and lane_offsets[0] == 0:
        a_stk = x_win[:, :tile_l]                          # already tap-folded (strided path)
    else:
        # Stack the KH*KW lane-shifted views along the contraction dim.
        a_stk = jnp.concatenate(
            [x_win[:, off:off + tile_l] for off in lane_offsets], axis=0)
    acc = jnp.dot(w_ref[...], a_stk, preferred_element_type=jnp.float32)
    o_ref[0, :, :] = jnp.maximum(acc + b_ref[...], 0.0).astype(o_ref.dtype)


# -----------------------------------------------------------------------------
# ConvBlock forward (norm='none', activation='relu', pad_type='zero')
# -----------------------------------------------------------------------------
def conv_block_forward(x, weight, bias, *, stride=1, padding=0):
    """
    x:      (N, C, H, W)    float32, NCHW
    weight: (OC, C, KH, KW) PyTorch Conv2d weight layout
    bias:   (OC,)
    Returns (N, OC, OH, OW) == ReLU(Conv2d(ZeroPad2d(padding)(x))).
    """
    N, C, H, W = x.shape
    OC, _, KH, KW = weight.shape

    x_pad = jnp.pad(x, ((0, 0), (0, 0), (padding, padding), (padding, padding)))
    HP, WP = H + 2 * padding, W + 2 * padding
    OH = (HP - KH) // stride + 1
    OW = (WP - KW) // stride + 1
    T = KH * KW

    # Channel padding: multiples of 16 (bf16 sublane packing); OC tiled to <=256.
    CP = _round_up(C, 16)
    OCP = _round_up(OC, 16)
    if OCP > 256:
        OCP = _round_up(OCP, 256)
        OC_TILE = 256
    else:
        OC_TILE = OCP
    NT_OC = OCP // OC_TILE
    K = T * CP

    # bf16 MXU operands, channel dims padded.
    xq = x_pad.astype(jnp.bfloat16)
    wq = weight.astype(jnp.bfloat16)
    if CP != C:
        xq = jnp.pad(xq, ((0, 0), (0, CP - C), (0, 0), (0, 0)))
        wq = jnp.pad(wq, ((0, 0), (0, CP - C), (0, 0), (0, 0)))
    if OCP != OC:
        wq = jnp.pad(wq, ((0, OCP - OC), (0, 0), (0, 0), (0, 0)))
    # Tap-folded weights: W_fold[oc, (kh*KW + kw)*CP + c] = w[oc, c, kh, kw].
    w_fold = wq.transpose(0, 2, 3, 1).reshape(OCP, K)
    b2d = jnp.pad(bias.astype(jnp.float32), (0, OCP - OC)).reshape(OCP, 1)

    if stride == 1:
        # Output lanes p = oh*WP + ow (columns ow >= OW are junk, sliced later);
        # tap (kh, kw) reads lane p + kh*WP + kw of the flattened padded image.
        L_out = OH * WP
        halo = (KH - 1) * WP + (KW - 1)
        lane_offsets = tuple(kh * WP + kw for kh in range(KH) for kw in range(KW))
        r_rows = CP
        base = xq.reshape(N, CP, HP * WP)        # no KH band / im2col tensor in HBM
    else:
        # General-stride fallback: lane-dense, tap-folded im2col in the wrapper.
        L_out = OH * OW
        halo = 0
        lane_offsets = (0,)
        r_rows = K
        cols = [xq[:, :, kh:kh + stride * (OH - 1) + 1:stride,
                       kw:kw + stride * (OW - 1) + 1:stride]
                for kh in range(KH) for kw in range(KW)]
        base = jnp.concatenate(cols, axis=1).reshape(N, K, L_out)

    cap = _vmem_capacity_bytes()
    budget = min(int(cap * 0.45), 48 << 20)
    TL = _pick_tile_l(L_out, halo, r_rows, OC_TILE, K, budget)
    TL_IN = _round_up(TL + halo, 128)
    NT_L = -(-L_out // TL)                       # cdiv
    L_need = max(base.shape[-1], (NT_L - 1) * TL + TL_IN)
    base = jnp.pad(base, ((0, 0), (0, 0), (0, L_need - base.shape[-1])))
    # Pre-baked per-lane-tile halo slabs so the grid-tiled lane dim keeps its halo.
    a = jnp.stack([base[:, :, lt * TL: lt * TL + TL_IN] for lt in range(NT_L)],
                  axis=1)                        # (N, NT_L, r_rows, TL_IN)

    kernel = functools.partial(_conv_block_kernel,
                               lane_offsets=lane_offsets, tile_l=TL)
    footprint = _block_footprint_bytes(r_rows, TL_IN, OC_TILE, TL, K)
    vmem_limit = int(min(int(cap * 0.85), max(2 * footprint, 32 << 20)))

    out = pl.pallas_call(
        kernel,
        out_shape=jax.ShapeDtypeStruct((N, OCP, NT_L * TL), jnp.float32),
        grid_spec=pltpu.PrefetchScalarGridSpec(
            num_scalar_prefetch=0,
            grid=(N, NT_OC, NT_L),
            in_specs=[
                pl.BlockSpec((1, 1, r_rows, TL_IN), lambda n, ot, lt: (n, lt, 0, 0)),
                pl.BlockSpec((OC_TILE, K), lambda n, ot, lt: (ot, 0)),
                pl.BlockSpec((OC_TILE, 1), lambda n, ot, lt: (ot, 0)),
            ],
            out_specs=pl.BlockSpec((1, OC_TILE, TL), lambda n, ot, lt: (n, ot, lt)),
        ),
        compiler_params=pltpu.CompilerParams(
            dimension_semantics=("parallel", "parallel", "parallel"),
            vmem_limit_bytes=vmem_limit,
        ),
    )(a, w_fold, b2d)

    if stride == 1:
        out = out[:, :OC, :OH * WP].reshape(N, OC, OH, WP)[:, :, :, :OW]
    else:
        out = out[:, :OC, :OH * OW].reshape(N, OC, OH, OW)
    return out


# -----------------------------------------------------------------------------
# Demo / correctness check
# -----------------------------------------------------------------------------
if __name__ == "__main__":
    # ConvBlock(input_dim=4, output_dim=8, kernel_size=3, stride, padding=1,
    #           norm='none', activation='relu', pad_type='zero', use_bias=True)
    N, C, H, W = 2, 4, 16, 16
    OC, KH, KW = 8, 3, 3

    key = jax.random.PRNGKey(0)
    kx, kw_, kb = jax.random.split(key, 3)
    x = jax.random.normal(kx, (N, C, H, W), dtype=jnp.float32)
    fan_in = C * KH * KW
    bound = 1.0 / (fan_in ** 0.5)
    weight = jax.random.uniform(kw_, (OC, C, KH, KW), jnp.float32, -bound, bound)
    bias = jax.random.uniform(kb, (OC,), jnp.float32, -bound, bound)

    # Reference with the same bf16 operand quantization (f32 accumulation),
    # matching the PyTorch module's pad -> conv -> relu semantics.
    xq = x.astype(jnp.bfloat16).astype(jnp.float32)
    wq = weight.astype(jnp.bfloat16).astype(jnp.float32)

    def ref_fn(stride, padding):
        r = jax.lax.conv_general_dilated(
            xq, wq, window_strides=(stride, stride),
            padding=[(padding, padding), (padding, padding)],
            dimension_numbers=("NCHW", "OIHW", "NCHW"))
        return jnp.maximum(r + bias[None, :, None, None], 0.0)

    for stride, padding in [(1, 1), (2, 1)]:
        fwd = jax.jit(functools.partial(conv_block_forward,
                                        stride=stride, padding=padding))
        y = jax.block_until_ready(fwd(x, weight, bias))
        ref = ref_fn(stride, padding)
        assert y.shape == ref.shape, (y.shape, ref.shape)
        err = float(jnp.max(jnp.abs(y - ref)))
        assert err < 2e-3, (stride, padding, err)

    print("KERNEL_OK")
</pallas_src>

<mosaic_0001>
module attributes {stable_mosaic.version = 11 : i64} {
  func.func @_conv_block_kernel(%arg0: i32, %arg1: i32, %arg2: i32, %arg3: memref<1x1x16x512xbf16, #tpu.memory_space<vmem>>, %arg4: memref<16x144xbf16, #tpu.memory_space<vmem>>, %arg5: memref<16x1xf32, #tpu.memory_space<vmem>>, %arg6: memref<1x16x384xf32, #tpu.memory_space<vmem>>) attributes {dimension_semantics = [#tpu.dimension_semantics<parallel>, #tpu.dimension_semantics<parallel>, #tpu.dimension_semantics<parallel>], iteration_bounds = array<i64: 2, 1, 1>, scalar_prefetch = 0 : i64, scratch_operands = 0 : i64, tpu.core_type = #tpu.core_type<tc>, window_params = [{transform_indices = @transform_0, window_bounds = array<i64: 1, 1, 16, 512>}, {transform_indices = @transform_1, window_bounds = array<i64: 16, 144>}, {transform_indices = @transform_2, window_bounds = array<i64: 16, 1>}, {transform_indices = @transform_3, window_bounds = array<i64: 1, 16, 384>}]} {
    %c0 = arith.constant 0 : index
    %c0_0 = arith.constant 0 : index
    %c0_1 = arith.constant 0 : index
    %c0_2 = arith.constant 0 : index
    %0 = vector.load %arg3[%c0, %c0_0, %c0_1, %c0_2] : memref<1x1x16x512xbf16, #tpu.memory_space<vmem>>, vector<1x1x16x512xbf16>
    %1 = vector.shape_cast %0 : vector<1x1x16x512xbf16> to vector<16x512xbf16>
    %2 = vector.extract_strided_slice %1 {offsets = [0, 0], sizes = [16, 384], strides = [1, 1]} : vector<16x512xbf16> to vector<16x384xbf16>
    %3 = vector.extract_strided_slice %1 {offsets = [0, 1], sizes = [16, 384], strides = [1, 1]} : vector<16x512xbf16> to vector<16x384xbf16>
    %4 = vector.extract_strided_slice %1 {offsets = [0, 2], sizes = [16, 384], strides = [1, 1]} : vector<16x512xbf16> to vector<16x384xbf16>
    %5 = vector.extract_strided_slice %1 {offsets = [0, 18], sizes = [16, 384], strides = [1, 1]} : vector<16x512xbf16> to vector<16x384xbf16>
    %6 = vector.extract_strided_slice %1 {offsets = [0, 19], sizes = [16, 384], strides = [1, 1]} : vector<16x512xbf16> to vector<16x384xbf16>
    %7 = vector.extract_strided_slice %1 {offsets = [0, 20], sizes = [16, 384], strides = [1, 1]} : vector<16x512xbf16> to vector<16x384xbf16>
    %8 = vector.extract_strided_slice %1 {offsets = [0, 36], sizes = [16, 384], strides = [1, 1]} : vector<16x512xbf16> to vector<16x384xbf16>
    %9 = vector.extract_strided_slice %1 {offsets = [0, 37], sizes = [16, 384], strides = [1, 1]} : vector<16x512xbf16> to vector<16x384xbf16>
    %10 = vector.extract_strided_slice %1 {offsets = [0, 38], sizes = [16, 384], strides = [1, 1]} : vector<16x512xbf16> to vector<16x384xbf16>
    %11 = tpu.concatenate %2, %3, %4, %5, %6, %7, %8, %9, %10 in 0 : vector<16x384xbf16>, vector<16x384xbf16>, vector<16x384xbf16>, vector<16x384xbf16>, vector<16x384xbf16>, vector<16x384xbf16>, vector<16x384xbf16>, vector<16x384xbf16>, vector<16x384xbf16> -> vector<144x384xbf16>
    %c0_3 = arith.constant 0 : index
    %c0_4 = arith.constant 0 : index
    %12 = vector.load %arg4[%c0_3, %c0_4] : memref<16x144xbf16, #tpu.memory_space<vmem>>, vector<16x144xbf16>
    %cst = arith.constant dense<0.000000e+00> : vector<16x384xf32>
    %13 = tpu.matmul %12, %11, %cst {dimension_numbers = #tpu.dot_dimension_numbers<[1], [0], [0], [1], [0, 0, 1, 1], [], []>} : vector<16x144xbf16>, vector<144x384xbf16>, vector<16x384xf32> -> vector<16x384xf32>
    %c0_5 = arith.constant 0 : index
    %c0_6 = arith.constant 0 : index
    %14 = vector.load %arg5[%c0_5, %c0_6] : memref<16x1xf32, #tpu.memory_space<vmem>>, vector<16x1xf32>
    %15 = vector.broadcast %14 : vector<16x1xf32> to vector<16x384xf32>
    %16 = arith.addf %13, %15 : vector<16x384xf32>
    %cst_7 = arith.constant 0.000000e+00 : f32
    %17 = vector.broadcast %cst_7 : f32 to vector<16x384xf32>
    %18 = arith.maximumf %16, %17 : vector<16x384xf32>
    %c0_8 = arith.constant 0 : index
    %c0_9 = arith.constant 0 : index
    %c0_10 = arith.constant 0 : index
    %19 = vector.load %arg6[%c0_8, %c0_9, %c0_10] : memref<1x16x384xf32, #tpu.memory_space<vmem>>, vector<1x16x384xf32>
    %20 = vector.shape_cast %19 : vector<1x16x384xf32> to vector<16x384xf32>
    %21 = vector.shape_cast %18 : vector<16x384xf32> to vector<1x16x384xf32>
    tpu.vector_store %arg6[%c0_8, %c0_9, %c0_10], %21 {strides = array<i32>} : memref<1x16x384xf32, #tpu.memory_space<vmem>>, vector<1x16x384xf32>,
    return
  }
  func.func @transform_0(%arg0: i32, %arg1: i32, %arg2: i32) -> (i32, i32, i32, i32) {
    %c0_i32 = arith.constant 0 : i32
    %c0_i32_0 = arith.constant 0 : i32
    %c0_i32_1 = arith.constant 0 : i32
    return %arg0, %arg2, %c0_i32, %c0_i32_0 : i32, i32, i32, i32
  }
  func.func @transform_1(%arg0: i32, %arg1: i32, %arg2: i32) -> (i32, i32) {
    %c0_i32 = arith.constant 0 : i32
    %c0_i32_0 = arith.constant 0 : i32
    return %arg1, %c0_i32 : i32, i32
  }
  func.func @transform_2(%arg0: i32, %arg1: i32, %arg2: i32) -> (i32, i32) {
    %c0_i32 = arith.constant 0 : i32
    %c0_i32_0 = arith.constant 0 : i32
    return %arg1, %c0_i32 : i32, i32
  }
  func.func @transform_3(%arg0: i32, %arg1: i32, %arg2: i32) -> (i32, i32, i32) {
    %c0_i32 = arith.constant 0 : i32
    return %arg0, %arg1, %arg2 : i32, i32, i32
  }
}

</mosaic_0001>

<llo_original>
// kernel: conv_block_forward.1
$region0: #{conv_block_forward.1}
  #allocation0 [shape = 'u32[]', space=smem, size = 0x4, offset = 0x4, fixed_abs, tag = 'smem constant byte address 0x4 - core index']
  #allocation1 [shape = 'u32[144,128]{1,0:T(1,128)}', space=vmem, size = 0x12000, scoped, tag = 'internal scratch']
  %s0 = inlined_call_operand.vmem [shape: bf16[2,1,16,512], index: 0, kind: input, shape index: {}]
  %s1 = inlined_call_operand.vmem [shape: bf16[16,144], index: 1, kind: input, shape index: {}]
  %s2 = inlined_call_operand.vmem [shape: f32[16,1], index: 2, kind: input, shape index: {}]
  %s3 = inlined_call_operand.vmem [shape: f32[2,16,384], index: 3, kind: output, shape index: {}]
  %s4 = sld [smem:[#allocation0]]
  $region45: #{conv_block_forward.1} parent=0
    _
  %s6 = ssub.s32 1, %s4
  %s7 = scalar_select 0, %s6, %s4
  loop: start=0, step=1, limit=4
  $region2: #{conv_block_forward.1} parent=0 // loop_pre_header
    _
  $region3: #{conv_block_forward.1} parent=0 // loop_header
    %s9 = sphi 0, %s13
    %p10 = scmp.ge.s32.totalorder %s9, 4
    %s16 = sphi 0, %s35
    %s17 = sphi 0, %s31
    %s18 = sphi 0, %s27
    %s19 = sphi 0, %s16
    %s20 = sphi 0, %s17
    %s21 = sphi 0, %s18
    %s22 = sphi 0, %s19
    %s23 = sphi 0, %s20
    %s24 = sphi 0, %s21
    %s40 = sphi 0, %s42
    %s43 = sphi 0, %s40
    %s44 = sphi 0, %s43
    %s60 = sphi 0, %s44
    %s66 = sphi 0, %s68
    %s69 = sphi 0, %s66
    %s70 = sphi 0, %s69
    %s86 = sphi 0, %s70
    %s92 = sphi 0, %s94
    %s95 = sphi 0, %s92
    %s96 = sphi 0, %s95
    %s112 = sphi 0, %s96
    %s122 = sphi 0, %s124
    %s125 = sphi 0, %s122
    %s126 = sphi 0, %s125
    %s142 = sphi 0, %s126
  $region4: #{conv_block_forward.1} parent=0 // loop_header_branch
    %12 = sbr.rel (%p10) target = $region8
  $region5: #{conv_block_forward.1} parent=0 // loop_body
    %s14 = ssub.s32 %s9, 1
    %s15 = ssub.s32 %s9, 2
    %s25 = sadd.s32 1, %s18
    %p26 = scmp.ge.s32.totalorder %s25, 1
    %s27 = scalar_select %p26, 0, %s25
    %s28 = sadd.s32 1, %s17
    %s29 = scalar_select %p26, %s28, %s17
    %p30 = scmp.ge.s32.totalorder %s29, 1
    %s31 = scalar_select %p30, 0, %s29
    %s32 = sadd.s32 1, %s16
    %s33 = scalar_select %p30, %s32, %s16
    %p34 = scmp.ge.s32.totalorder %s33, 2
    %s35 = scalar_select %p34, 0, %s33
    %s36 = ssub.s32 %s16, %s35
    %s37 = ssub.s32 %s18, %s27
    %s38 = sor.u32 %s36, %s37
    %p39 = scmp.eq.s32.totalorder %s38, 0
    %s41 = sadd.s32 %s40, 1
    %s42 = scalar_select %p39, %s40, %s41
    %p45 = pneg %p39
    %p46 = scmp.eq.s32.totalorder %s9, 1
    %p47 = por %p45, %p46
    %p48 = scmp.ne.s32.totalorder %s40, %s43
    %p49 = scmp.eq.s32.totalorder %s9, 0
    %p50 = por %p48, %p49
    %p51 = scmp.ne.s32.totalorder %s40, %s43
    %p52 = scmp.eq.s32.totalorder %s14, 1
    %p53 = por %p51, %p52
    %p54 = scmp.ne.s32.totalorder %s43, %s44
    %p55 = scmp.eq.s32.totalorder %s14, 0
    %p56 = por %p54, %p55
    %p57 = scmp.ne.s32.totalorder %s43, %s44
    %p58 = scmp.eq.s32.totalorder %s15, 1
    %p59 = por %p57, %p58
    %p61 = scmp.ne.s32.totalorder %s44, %s60
    %p62 = scmp.eq.s32.totalorder %s15, 0
    %p63 = por %p61, %p62
    %s64 = ssub.s32 %s17, %s31
    %p65 = scmp.eq.s32.totalorder %s64, 0
    %s67 = sadd.s32 %s66, 1
    %s68 = scalar_select %p65, %s66, %s67
    %p71 = pneg %p65
    %p72 = scmp.eq.s32.totalorder %s9, 1
    %p73 = por %p71, %p72
    %p74 = scmp.ne.s32.totalorder %s66, %s69
    %p75 = scmp.eq.s32.totalorder %s9, 0
    %p76 = por %p74, %p75
    %p77 = scmp.ne.s32.totalorder %s66, %s69
    %p78 = scmp.eq.s32.totalorder %s14, 1
    %p79 = por %p77, %p78
    %p80 = scmp.ne.s32.totalorder %s69, %s70
    %p81 = scmp.eq.s32.totalorder %s14, 0
    %p82 = por %p80, %p81
    %p83 = scmp.ne.s32.totalorder %s69, %s70
    %p84 = scmp.eq.s32.totalorder %s15, 1
    %p85 = por %p83, %p84
    %p87 = scmp.ne.s32.totalorder %s70, %s86
    %p88 = scmp.eq.s32.totalorder %s15, 0
    %p89 = por %p87, %p88
    %s90 = ssub.s32 %s17, %s31
    %p91 = scmp.eq.s32.totalorder %s90, 0
    %s93 = sadd.s32 %s92, 1
    %s94 = scalar_select %p91, %s92, %s93
    %p97 = pneg %p91
    %p98 = scmp.eq.s32.totalorder %s9, 1
    %p99 = por %p97, %p98
    %p100 = scmp.ne.s32.totalorder %s92, %s95
    %p101 = scmp.eq.s32.totalorder %s9, 0
    %p102 = por %p100, %p101
    %p103 = scmp.ne.s32.totalorder %s92, %s95
    %p104 = scmp.eq.s32.totalorder %s14, 1
    %p105 = por %p103, %p104
    %p106 = scmp.ne.s32.totalorder %s95, %s96
    %p107 = scmp.eq.s32.totalorder %s14, 0
    %p108 = por %p106, %p107
    %p109 = scmp.ne.s32.totalorder %s95, %s96
    %p110 = scmp.eq.s32.totalorder %s15, 1
    %p111 = por %p109, %p110
    %p113 = scmp.ne.s32.totalorder %s96, %s112
    %p114 = scmp.eq.s32.totalorder %s15, 0
    %p115 = por %p113, %p114
    %s116 = ssub.s32 %s16, %s35
    %s117 = ssub.s32 %s17, %s31
    %s118 = sor.u32 %s116, %s117
    %s119 = ssub.s32 %s18, %s27
    %s120 = sor.u32 %s118, %s119
    %p121 = scmp.eq.s32.totalorder %s120, 0
    %s123 = sadd.s32 %s122, 1
    %s124 = scalar_select %p121, %s122, %s123
    %p127 = pneg %p121
    %p128 = scmp.eq.s32.totalorder %s9, 1
    %p129 = por %p127, %p128
    %p130 = scmp.ne.s32.totalorder %s122, %s125
    %p131 = scmp.eq.s32.totalorder %s9, 0
    %p132 = por %p130, %p131
    %p133 = scmp.ne.s32.totalorder %s122, %s125
    %p134 = scmp.eq.s32.totalorder %s14, 1
    %p135 = por %p133, %p134
    %p136 = scmp.ne.s32.totalorder %s125, %s126
    %p137 = scmp.eq.s32.totalorder %s14, 0
    %p138 = por %p136, %p137
    %p139 = scmp.ne.s32.totalorder %s125, %s126
    %p140 = scmp.eq.s32.totalorder %s15, 1
    %p141 = por %p139, %p140
    %p143 = scmp.ne.s32.totalorder %s126, %s142
    %p144 = scmp.eq.s32.totalorder %s15, 0
    %p145 = por %p143, %p144
    %p146 = scmp.le.s32.totalorder 1, %s9
    %p147 = scmp.lt.s32.totalorder %s9, 3
    %p148 = pnand %p146, %p147
    %p149 = pneg %p148
    // Predicated region
    $region9: #{conv_block_forward.1} parent=5 // pred_check
      _
    $region10: #{conv_block_forward.1} parent=5 // pred_check_branch
      %151 = sbr.rel (%p148) target = $region12
    $region11: #{conv_block_forward.1} parent=5 // pred_region
      %s152 = ssub.s32 %s9, 1
      // Predicated region
      $region13: #{conv_block_forward.1} parent=11 // pred_check
        %p153 = pneg %p82
      $region14: #{conv_block_forward.1} parent=11 // pred_check_branch
        %155 = sbr.rel (%p153) target = $region16
      $region15: #{conv_block_forward.1} parent=11 // pred_region
        %s156 = smul.u32 2, %s20
        %p157 = scmp.lt.s32.totalorder %s156, 1
        %s158 = scalar_select %p157, %s156, 1
        %s159 = smul.addr %s158, 2
        %s160 = smul.addr %s159, 4
        %s161 = scalar_lea.vmem %s1, %s160
        %s162 = smul.u32 2, %s20
      $region16: #{conv_block_forward.1} parent=11 // pred_fallthru
        _
      // Predicated region
      $region17: #{conv_block_forward.1} parent=11 // pred_check
        %p163 = pneg %p108
      $region18: #{conv_block_forward.1} parent=11 // pred_check_branch
        %165 = sbr.rel (%p163) target = $region20
      $region19: #{conv_block_forward.1} parent=11 // pred_region
        %s166 = smul.u32 2, %s20
        %p167 = scmp.lt.s32.totalorder %s166, 1
        %s168 = scalar_select %p167, %s166, 1
        %s169 = smul.addr %s168, 8
        %s170 = scalar_lea.vmem %s2, %s169
        %s171 = smul.u32 2, %s20
      $region20: #{conv_block_forward.1} parent=11 // pred_fallthru
        _
    $region12: #{conv_block_forward.1} parent=5 // pred_fallthru
      _
    %p172 = scmp.lt.s32.totalorder %s9, 2
    // Predicated region
    $region21: #{conv_block_forward.1} parent=5 // pred_check
      %p173 = pneg %p172
    $region22: #{conv_block_forward.1} parent=5 // pred_check_branch
      %175 = sbr.rel (%p173) target = $region24
    $region23: #{conv_block_forward.1} parent=5 // pred_region
      // Predicated region
      $region25: #{conv_block_forward.1} parent=23 // pred_check
        %p176 = pneg %p50
      $region26: #{conv_block_forward.1} parent=23 // pred_check_branch
        %178 = sbr.rel (%p176) target = $region28
      $region27: #{conv_block_forward.1} parent=23 // pred_region
        %p179 = scmp.lt.s32.totalorder %s16, 1
        %s180 = scalar_select %p179, %s16, 1
        %p181 = scmp.lt.s32.totalorder %s18, 0
        %s182 = scalar_select %p181, %s18, 0
        %s183 = smul.addr %s182, 8
        %s184 = smul.addr %s180, 8
        %s185 = sadd.s32 %s183, %s184
        %s186 = smul.addr %s185, 4
        %s187 = scalar_lea.vmem %s0, %s186
      $region28: #{conv_block_forward.1} parent=23 // pred_fallthru
        _
    $region24: #{conv_block_forward.1} parent=5 // pred_fallthru
      _
    %p188 = scmp.le.s32.totalorder 1, %s9
    %p189 = scmp.lt.s32.totalorder %s9, 3
    %p190 = pnand %p188, %p189
    %p191 = pneg %p190
    // Predicated region
    $region29: #{conv_block_forward.1} parent=5 // pred_check
      _
    $region30: #{conv_block_forward.1} parent=5 // pred_check_branch
      %193 = sbr.rel (%p190) target = $region32
    $region31: #{conv_block_forward.1} parent=5 // pred_region
      %s194 = ssub.s32 %s9, 1
      %p195 = scmp.lt.s32.totalorder %s19, 1
      %s196 = scalar_select %p195, %s19, 1
      %p197 = scmp.lt.s32.totalorder %s21, 0
      %s198 = scalar_select %p197, %s21, 0
      %s199 = smul.addr %s198, 8
      %s200 = smul.addr %s196, 8
      %s201 = sadd.s32 %s199, %s200
      %s202 = smul.addr %s201, 4
      %s203 = scalar_lea.vmem %s0, %s202
      %p204 = pneg %p56
      %p205 = pneg %p53
      %s206 = smul.u32 2, %s20
      %p207 = scmp.lt.s32.totalorder %s206, 1
      %s208 = scalar_select %p207, %s206, 1
      %s209 = smul.addr %s208, 2
      %s210 = smul.addr %s209, 4
      %s211 = scalar_lea.vmem %s1, %s210
      %p212 = pneg %p82
      %p213 = pneg %p79
      %s214 = smul.u32 2, %s20
      %p215 = scmp.lt.s32.totalorder %s214, 1
      %s216 = scalar_select %p215, %s214, 1
      %s217 = smul.addr %s216, 8
      %s218 = scalar_lea.vmem %s2, %s217
      %p219 = pneg %p108
      %p220 = pneg %p105
      %p221 = pneg %p138
      %p222 = pneg %p135
      %s223 = smul.u32 2, %s20
      %s224 = smul.u32 3, %s21
      %p225 = scmp.lt.s32.totalorder %s19, 1
      %s226 = scalar_select %p225, %s19, 1
      %p227 = scmp.lt.s32.totalorder %s223, 1
      %s228 = scalar_select %p227, %s223, 1
      %p229 = scmp.lt.s32.totalorder %s224, 2
      %s230 = scalar_select %p229, %s224, 2
      %s231 = smul.addr %s228, 3
      %s232 = sadd.s32 %s230, %s231
      %s233 = smul.addr %s226, 6
      %s234 = sadd.s32 %s232, %s233
      %s235 = smul.addr %s234, 8
      %s236 = scalar_lea.vmem %s3, %s235
      %p237 = scmp.lt.s32.totalorder %s19, 1
      %s238 = scalar_select %p237, %s19, 1
      %p239 = scmp.lt.s32.totalorder %s21, 0
      %s240 = scalar_select %p239, %s21, 0
      %s241 = smul.addr %s240, 8
      %s242 = smul.addr %s238, 8
      %s243 = sadd.s32 %s241, %s242
      %s244 = smul.addr %s243, 4
      %s245 = scalar_lea.vmem %s0, %s244
      %s246 = smul.u32 2, %s20
      %p247 = scmp.lt.s32.totalorder %s246, 1
      %s248 = scalar_select %p247, %s246, 1
      %s249 = smul.addr %s248, 2
      %s250 = smul.addr %s249, 4
      %s251 = scalar_lea.vmem %s1, %s250
      %s252 = smul.u32 2, %s20
      %s253 = smul.u32 2, %s20
      %p254 = scmp.lt.s32.totalorder %s253, 1
      %s255 = scalar_select %p254, %s253, 1
      %s256 = smul.addr %s255, 8
      %s257 = scalar_lea.vmem %s2, %s256
      %s258 = smul.u32 2, %s20
      %s259 = smul.u32 2, %s20
      %s260 = smul.u32 3, %s21
      %p261 = scmp.lt.s32.totalorder %s19, 1
      %s262 = scalar_select %p261, %s19, 1
      %p263 = scmp.lt.s32.totalorder %s259, 1
      %s264 = scalar_select %p263, %s259, 1
      %p265 = scmp.lt.s32.totalorder %s260, 2
      %s266 = scalar_select %p265, %s260, 2
      %s267 = smul.addr %s264, 3
      %s268 = sadd.s32 %s266, %s267
      %s269 = smul.addr %s262, 6
      %s270 = sadd.s32 %s268, %s269
      %s271 = smul.addr %s270, 8
      %s272 = scalar_lea.vmem %s3, %s271
      %s273 = smul.u32 2, %s20
      %s274 = smul.u32 3, %s21
      %v276 = vld [vmem:[%s245] sm:$0xff]
      %v277 = vld [vmem:[%s245 + $0x8] sm:$0xff]
      %v278 = vld [vmem:[%s245 + $0x10] sm:$0xff]
      %v279 = vld [vmem:[%s245 + $0x18] sm:$0xff]
      %v284 = vunpack.c.l.b16 %v276
      %v285 = vunpack.c.h.b16 %v276
      %v286 = vunpack.c.l.b16 %v277
      %v287 = vunpack.c.l.b16 %v278
      %v288 = vunpack.c.h.b16 %v278
      %v289 = vunpack.c.l.b16 %v279
      %v290 = vpack.c.b16 %v287, %v284
      %v291 = vpack.c.b16 %v288, %v285
      %v292 = vpack.c.b16 %v289, %v286
      %v296 = vunpack.c.h.b16 %v277
      %v297 = vunpack.c.h.b16 %v279
      %v298 = vpack.c.b16 %v297, %v296
      %299 = vrot.lane.b32.xlu0 %v290, 127
      %v300 = vpop.permute.xlu0 %299
      %301 = vrot.lane.b32.xlu0 %v291, 127
      %v302 = vpop.permute.xlu0 %301
      %303 = vrot.lane.b32.xlu0 %v292, 127
      %v304 = vpop.permute.xlu0 %303
      %305 = vrot.lane.b32.xlu0 %v298, 127
      %v306 = vpop.permute.xlu0 %305
      %vm307 = vcmask 1039360
      %v308 = vsel %vm307, %v300, %v302
      %v309 = vsel %vm307, %v302, %v304
      %v310 = vsel %vm307, %v304, %v306
      %314 = vrot.lane.b32.xlu0 %v290, 126
      %v315 = vpop.permute.xlu0 %314
      %316 = vrot.lane.b32.xlu0 %v291, 126
      %v317 = vpop.permute.xlu0 %316
      %318 = vrot.lane.b32.xlu0 %v292, 126
      %v319 = vpop.permute.xlu0 %318
      %320 = vrot.lane.b32.xlu0 %v298, 126
      %v321 = vpop.permute.xlu0 %320
      %vm322 = vcmask 1031168
      %v323 = vsel %vm322, %v315, %v317
      %v324 = vsel %vm322, %v317, %v319
      %v325 = vsel %vm322, %v319, %v321
      %329 = vrot.lane.b32.xlu0 %v290, 110
      %v330 = vpop.permute.xlu0 %329
      %331 = vrot.lane.b32.xlu0 %v291, 110
      %v332 = vpop.permute.xlu0 %331
      %333 = vrot.lane.b32.xlu0 %v292, 110
      %v334 = vpop.permute.xlu0 %333
      %335 = vrot.lane.b32.xlu0 %v298, 110
      %v336 = vpop.permute.xlu0 %335
      %vm337 = vcmask 900096
      %v338 = vsel %vm337, %v330, %v332
      %v339 = vsel %vm337, %v332, %v334
      %v340 = vsel %vm337, %v334, %v336
      %344 = vrot.lane.b32.xlu0 %v290, 109
      %v345 = vpop.permute.xlu0 %344
      %346 = vrot.lane.b32.xlu0 %v291, 109
      %v347 = vpop.permute.xlu0 %346
      %348 = vrot.lane.b32.xlu0 %v292, 109
      %v349 = vpop.permute.xlu0 %348
      %350 = vrot.lane.b32.xlu0 %v298, 109
      %v351 = vpop.permute.xlu0 %350
      %vm352 = vcmask 891904
      %v353 = vsel %vm352, %v345, %v347
      %v354 = vsel %vm352, %v347, %v349
      %v355 = vsel %vm352, %v349, %v351
      %359 = vrot.lane.b32.xlu0 %v290, 108
      %v360 = vpop.permute.xlu0 %359
      %361 = vrot.lane.b32.xlu0 %v291, 108
      %v362 = vpop.permute.xlu0 %361
      %363 = vrot.lane.b32.xlu0 %v292, 108
      %v364 = vpop.permute.xlu0 %363
      %365 = vrot.lane.b32.xlu0 %v298, 108
      %v366 = vpop.permute.xlu0 %365
      %vm367 = vcmask 883712
      %v368 = vsel %vm367, %v360, %v362
      %v369 = vsel %vm367, %v362, %v364
      %v370 = vsel %vm367, %v364, %v366
      %374 = vrot.lane.b32.xlu0 %v290, 92
      %v375 = vpop.permute.xlu0 %374
      %376 = vrot.lane.b32.xlu0 %v291, 92
      %v377 = vpop.permute.xlu0 %376
      %378 = vrot.lane.b32.xlu0 %v292, 92
      %v379 = vpop.permute.xlu0 %378
      %380 = vrot.lane.b32.xlu0 %v298, 92
      %v381 = vpop.permute.xlu0 %380
      %vm382 = vcmask 752640
      %v383 = vsel %vm382, %v375, %v377
      %v384 = vsel %vm382, %v377, %v379
      %v385 = vsel %vm382, %v379, %v381
      %389 = vrot.lane.b32.xlu0 %v290, 91
      %v390 = vpop.permute.xlu0 %389
      %391 = vrot.lane.b32.xlu0 %v291, 91
      %v392 = vpop.permute.xlu0 %391
      %393 = vrot.lane.b32.xlu0 %v292, 91
      %v394 = vpop.permute.xlu0 %393
      %395 = vrot.lane.b32.xlu0 %v298, 91
      %v396 = vpop.permute.xlu0 %395
      %vm397 = vcmask 744448
      %v398 = vsel %vm397, %v390, %v392
      %v399 = vsel %vm397, %v392, %v394
      %v400 = vsel %vm397, %v394, %v396
      %404 = vrot.lane.b32.xlu0 %v290, 90
      %v405 = vpop.permute.xlu0 %404
      %406 = vrot.lane.b32.xlu0 %v291, 90
      %v407 = vpop.permute.xlu0 %406
      %408 = vrot.lane.b32.xlu0 %v292, 90
      %v409 = vpop.permute.xlu0 %408
      %410 = vrot.lane.b32.xlu0 %v298, 90
      %v411 = vpop.permute.xlu0 %410
      %vm412 = vcmask 736256
      %v413 = vsel %vm412, %v405, %v407
      %v414 = vsel %vm412, %v407, %v409
      %v415 = vsel %vm412, %v409, %v411
      %v419 = vld [vmem:[%s251] sm:$0xff]
      %v420 = vld [vmem:[%s251 + $0x8] sm:$0xff]
      %v421 = vld [vmem:[%s257] sm:$0xff]
      %v422 = vld [vmem:[%s257 + $0x8] sm:$0xff]
      %424 = vset.pattern.permute.xlu0 0
      %425 = vperm.xlu0 %424, %v421
      %v426 = vpop.permute.xlu0 %425
      %429 = vset.pattern.permute.xlu0 0
      %430 = vperm.xlu0 %429, %v422
      %v431 = vpop.permute.xlu0 %430
      %v435 = vunpack.c.l.b16 %v419
      %v436 = vunpack.c.h.b16 %v419
      %v437 = vunpack.c.l.b16 %v420
      %v438 = vunpack.c.h.b16 %v420
      %v439 = vpack.c.b16 %v437, %v435
      %v440 = vpack.c.b16 %v438, %v436
      %vm442 = vcmask 130048
      %v444 = vsel %vm442, %v440, 0
      %446 = vmatprep.subr.bf16.mxu0 %v291
      %447 = vmatpush1.bf16.msra.mxu0 %v290
      %448 = vmatprep.subr.bf16.mxu0 %v309
      %449 = vmatpush1.bf16.msra.mxu0 %v308
      %450 = vmatprep.subr.bf16.mxu0 %v324
      %451 = vmatpush1.bf16.msra.mxu0 %v323
      %452 = vmatprep.subr.bf16.mxu0 %v339
      %453 = vmatpush1.bf16.msra.mxu0 %v338
      %454 = vmatprep.subr.bf16.mxu0 %v354
      %455 = vmatpush1.bf16.msra.mxu0 %v353
      %456 = vmatprep.subr.bf16.mxu0 %v369
      %457 = vmatpush1.bf16.msra.mxu0 %v368
      %458 = vmatprep.subr.bf16.mxu0 %v384
      %459 = vmatpush1.bf16.msra.mxu0 %v383
      %460 = vmatprep.subr.bf16.mxu0 %v399
      %461 = vmatpush1.bf16.msra.mxu0 %v398
      %462 = vmatprep.subr.bf16.mxu0 %v414
      %463 = vmatpush1.bf16.msra.mxu0 %v413
      %464 = vmatprep.subr.bf16.mxu0 0
      %465 = vmatpush1.bf16.msra.mxu0 0
      %466 = vmatprep.subr.bf16.mxu0 0
      %467 = vmatpush1.bf16.msra.mxu0 0
      %468 = vmatprep.subr.bf16.mxu0 0
      %469 = vmatpush1.bf16.msra.mxu0 0
      %470 = vmatprep.subr.bf16.mxu0 0
      %471 = vmatpush1.bf16.msra.mxu0 0
      %472 = vmatprep.subr.bf16.mxu0 0
      %473 = vmatpush1.bf16.msra.mxu0 0
      %474 = vmatprep.subr.bf16.mxu0 0
      %475 = vmatpush1.bf16.msra.mxu0 0
      %476 = vmatprep.subr.bf16.mxu0 0
      %477 = vmatpush1.bf16.msra.mxu0 0
      %478 = vmatprep.mubr.bf16.mxu0 %v444
      %479 = vmatmul.mubr.bf16.gmra.mrb[0].mxu0 %v439
      %v480 = vpop.f32.mrb[0].mxu0
      %v481 = vadd.f32 %v426, %v480
      %v482 = vpop.f32.mrb[0].mxu0
      %v483 = vadd.f32 %v426, %v482
      %v484 = vpop.f32.mrb[0].mxu0
      %v485 = vadd.f32 %v431, %v484
      %v486 = vpop.f32.mrb[0].mxu0
      %v487 = vadd.f32 %v431, %v486
      %488 = vdwg.mxu0
      %489 = vmatprep.subr.bf16.mxu0 0
      %490 = vmatpush1.bf16.msra.mxu0 %v292
      %491 = vmatprep.subr.bf16.mxu0 0
      %492 = vmatpush1.bf16.msra.mxu0 %v310
      %493 = vmatprep.subr.bf16.mxu0 0
      %494 = vmatpush1.bf16.msra.mxu0 %v325
      %495 = vmatprep.subr.bf16.mxu0 0
      %496 = vmatpush1.bf16.msra.mxu0 %v340
      %497 = vmatprep.subr.bf16.mxu0 0
      %498 = vmatpush1.bf16.msra.mxu0 %v355
      %499 = vmatprep.subr.bf16.mxu0 0
      %500 = vmatpush1.bf16.msra.mxu0 %v370
      %501 = vmatprep.subr.bf16.mxu0 0
      %502 = vmatpush1.bf16.msra.mxu0 %v385
      %503 = vmatprep.subr.bf16.mxu0 0
      %504 = vmatpush1.bf16.msra.mxu0 %v400
      %505 = vmatprep.subr.bf16.mxu0 0
      %506 = vmatpush1.bf16.msra.mxu0 %v415
      %507 = vmatprep.subr.bf16.mxu0 0
      %508 = vmatpush1.bf16.msra.mxu0 0
      %509 = vmatprep.subr.bf16.mxu0 0
      %510 = vmatpush1.bf16.msra.mxu0 0
      %511 = vmatprep.subr.bf16.mxu0 0
      %512 = vmatpush1.bf16.msra.mxu0 0
      %513 = vmatprep.subr.bf16.mxu0 0
      %514 = vmatpush1.bf16.msra.mxu0 0
      %515 = vmatprep.subr.bf16.mxu0 0
      %516 = vmatpush1.bf16.msra.mxu0 0
      %517 = vmatprep.subr.bf16.mxu0 0
      %518 = vmatpush1.bf16.msra.mxu0 0
      %519 = vmatprep.subr.bf16.mxu0 0
      %520 = vmatpush1.bf16.msra.mxu0 0
      %521 = vmatprep.mubr.bf16.mxu0 %v444
      %522 = vmatmul.mubr.bf16.gmra.mrb[0].mxu0 %v439
      %v523 = vpop.f32.mrb[0].mxu0
      %v524 = vadd.f32 %v426, %v523
      %v525 = vpop.f32.mrb[0].mxu0
      %v526 = vpop.f32.mrb[0].mxu0
      %v527 = vadd.f32 %v431, %v526
      %v528 = vpop.f32.mrb[0].mxu0
      %529 = vdwg.mxu0
      %v530 = vmax.f32 %v481, 0.0
      %v531 = vmax.f32 %v483, 0.0
      %v532 = vmax.f32 %v524, 0.0
      %v533 = vmax.f32 %v485, 0.0
      %v534 = vmax.f32 %v487, 0.0
      %v535 = vmax.f32 %v527, 0.0
      %536 = vst [vmem:[%s272] sm:$0xff] %v530
      %537 = vst [vmem:[%s272 + $0x8] sm:$0xff] %v531
      %538 = vst [vmem:[%s272 + $0x10] sm:$0xff] %v532
      %539 = vst [vmem:[%s272 + $0x18] sm:$0xff] %v533
      %540 = vst [vmem:[%s272 + $0x20] sm:$0xff] %v534
      %541 = vst [vmem:[%s272 + $0x28] sm:$0xff] %v535
      %s542 = smul.u32 2, %s20
      %s543 = smul.u32 3, %s21
      %p544 = scmp.lt.s32.totalorder %s19, 1
      %s545 = scalar_select %p544, %s19, 1
      %p546 = scmp.lt.s32.totalorder %s542, 1
      %s547 = scalar_select %p546, %s542, 1
      %p548 = scmp.lt.s32.totalorder %s543, 2
      %s549 = scalar_select %p548, %s543, 2
      %s550 = smul.addr %s547, 3
      %s551 = sadd.s32 %s549, %s550
      %s552 = smul.addr %s545, 6
      %s553 = sadd.s32 %s551, %s552
      %s554 = smul.addr %s553, 8
      %s555 = scalar_lea.vmem %s3, %s554
      // Predicated region
      $region33: #{conv_block_forward.1} parent=31 // pred_check
        %p556 = pneg %p135
      $region34: #{conv_block_forward.1} parent=31 // pred_check_branch
        %558 = sbr.rel (%p556) target = $region36
      $region35: #{conv_block_forward.1} parent=31 // pred_region
        %s559 = smul.u32 2, %s20
        %s560 = smul.u32 3, %s21
      $region36: #{conv_block_forward.1} parent=31 // pred_fallthru
        _
    $region32: #{conv_block_forward.1} parent=5 // pred_fallthru
      _
    %p561 = scmp.le.s32.totalorder 2, %s9
    // Predicated region
    $region37: #{conv_block_forward.1} parent=5 // pred_check
      %p562 = pneg %p561
    $region38: #{conv_block_forward.1} parent=5 // pred_check_branch
      %564 = sbr.rel (%p562) target = $region40
    $region39: #{conv_block_forward.1} parent=5 // pred_region
      %s565 = ssub.s32 %s9, 2
      // Predicated region
      $region41: #{conv_block_forward.1} parent=39 // pred_check
        %p566 = pneg %p141
      $region42: #{conv_block_forward.1} parent=39 // pred_check_branch
        %568 = sbr.rel (%p566) target = $region44
      $region43: #{conv_block_forward.1} parent=39 // pred_region
        %s569 = smul.u32 2, %s23
        %s570 = smul.u32 3, %s24
        %p571 = scmp.lt.s32.totalorder %s22, 1
        %s572 = scalar_select %p571, %s22, 1
        %p573 = scmp.lt.s32.totalorder %s569, 1
        %s574 = scalar_select %p573, %s569, 1
        %p575 = scmp.lt.s32.totalorder %s570, 2
        %s576 = scalar_select %p575, %s570, 2
        %s577 = smul.addr %s574, 3
        %s578 = sadd.s32 %s576, %s577
        %s579 = smul.addr %s572, 6
        %s580 = sadd.s32 %s578, %s579
        %s581 = smul.addr %s580, 8
        %s582 = scalar_lea.vmem %s3, %s581
      $region44: #{conv_block_forward.1} parent=39 // pred_fallthru
        _
    $region40: #{conv_block_forward.1} parent=5 // pred_fallthru
      _
  $region6: #{conv_block_forward.1} parent=0 // loop_footer
    %s13 = sadd.s32 1, %s9
  $region7: #{conv_block_forward.1} parent=0 // loop_footer_branch
    %8 = sbr.rel target = $region3
  $region8: #{conv_block_forward.1} parent=0 // loop_exit
    _

</llo_original>
